<compile_context>
chip_gen: v7x
topology: tpu7x:2x2x1
jax: 0.10.0
libtpu: 0.0.40
codegen_flags: <defaults>
</compile_context>

<pallas_src>
import functools

import numpy as np
import jax
import jax.numpy as jnp
from jax.experimental import pallas as pl
from jax.experimental.pallas import tpu as pltpu


def _round_up(n, m):
    return (n + m - 1) // m * m


def basic_block_kernel(masks_ref, x_ref, w1_ref, s1_ref, b1_ref,
                       w2_ref, s2_ref, b2_ref, out_ref, *, W):
    """One (Cp, L) slab per grid step, L = NB * H * W (lane-dense).

    masks_ref : (9, L)  f32   per-tap border validity (1.0 / 0.0), period H*W
    x_ref     : (Cp, L) f32   channels-first, batch fused onto the lane axis
    w*_ref    : (Cp, 9*Cp)    conv weights, W_mat[co, t*Cp + ci] (bf16 or f32)
    s*/b*_ref : (Cp, 1) f32   folded BatchNorm scale / bias
    out_ref   : (Cp, L)
    """
    Cp, L = x_ref.shape
    x = x_ref[...]                                        # (Cp, L) f32

    # Tap t = (dy+1)*3 + (dx+1); out[q] reads x[q + dy*W + dx] -> roll by -d.
    shifts = [(-(dy * W + dx)) % L for dy in (-1, 0, 1) for dx in (-1, 0, 1)]

    def im2col(v):
        # (Cp, L) -> (9*Cp, L): masked XLU rolls, f32 sublane-aligned stack,
        # single cast to the matmul operand dtype afterwards.
        taps = []
        for t, s in enumerate(shifts):
            shifted = v if s == 0 else pltpu.roll(v, shift=s, axis=1)
            if t != 4:                                    # center tap always valid
                shifted = shifted * masks_ref[t, :].reshape(1, L)
            taps.append(shifted)
        return jnp.concatenate(taps, axis=0).astype(w1_ref.dtype)

    # ---- conv1 (one fused K=9*Cp MXU matmul) + folded BN + ReLU ----
    acc1 = jnp.dot(w1_ref[...], im2col(x), preferred_element_type=jnp.float32)
    y = jnp.maximum(acc1 * s1_ref[...] + b1_ref[...], 0.0)

    # ---- conv2 + folded BN ----
    acc2 = jnp.dot(w2_ref[...], im2col(y), preferred_element_type=jnp.float32)
    z = acc2 * s2_ref[...] + b2_ref[...]

    # ---- identity residual + ReLU ----
    out_ref[...] = jnp.maximum(z + x, 0.0).astype(out_ref.dtype)


def basic_block_nchw(x, w1, s1, b1, w2, s2, b2, *,
                     matmul_dtype=jnp.bfloat16, max_lanes=8192):
    """x: (N, C, H, W) float32. w1/w2: (9, Cin, Cout) tap-major (t = ky*3+kx).
    s*/b*: (C,) folded BN scale / bias. Returns (N, C, H, W)."""
    N, C, H, W = x.shape
    P = H * W
    Cp = _round_up(C, 8)                     # f32 sublane alignment

    # --- how many batch elements to fuse onto the lane axis per grid step ---
    if P % 128 == 0 and N * P > max_lanes:
        NB = max((nb for nb in range(1, N + 1)
                  if N % nb == 0 and nb * P <= max_lanes), default=1)
    else:
        NB = N                               # single step; block == full array
    # TODO(synk): for ResNet-scale C / H*W add a spatial lane-axis grid with
    # halo-aware masks, pl.Buffered(1) specs for the grid-invariant weights,
    # and an explicit vmem_limit_bytes so tiles fit v7x's 64 MiB VMEM and both
    # TensorCores are fed.
    # TODO(synk): pad P up to a multiple of 128 (masked like another border)
    # when H*W is not lane-aligned (e.g. 14x14 stages).
    L = NB * P

    # --- batch fused onto lanes, channels zero-padded to Cp ---
    x_fused = jnp.transpose(x.reshape(N, C, P), (1, 0, 2)).reshape(C, N * P)
    if Cp > C:
        x_fused = jnp.pad(x_fused, ((0, Cp - C), (0, 0)))

    # --- weights: W_mat[co, t*Cp + ci] = w[t, ci, co], zero-padded ---
    def mat(w):
        wp = jnp.pad(w, ((0, 0), (0, Cp - C), (0, Cp - C)))
        return (jnp.transpose(wp, (2, 0, 1))
                .reshape(Cp, 9 * Cp).astype(matmul_dtype))
    w1_mat, w2_mat = mat(w1), mat(w2)

    def col(v):
        return jnp.pad(v, (0, Cp - C)).reshape(Cp, 1).astype(jnp.float32)
    s1c, b1c, s2c, b2c = col(s1), col(b1), col(s2), col(b2)

    # --- per-tap border validity masks (trace-time constants, period P) ---
    pidx = np.arange(P)
    yi, xi = pidx // W, pidx % W
    masks = np.ones((9, P), np.float32)
    t = 0
    for dy in (-1, 0, 1):
        for dx in (-1, 0, 1):
            m = np.ones(P, bool)
            if dy == -1:
                m &= yi >= 1
            if dy == 1:
                m &= yi <= H - 2
            if dx == -1:
                m &= xi >= 1
            if dx == 1:
                m &= xi <= W - 2
            masks[t] = m
            t += 1
    masks_lane = jnp.asarray(np.tile(masks, (1, NB)))     # (9, L)

    out_fused = pl.pallas_call(
        functools.partial(basic_block_kernel, W=W),
        out_shape=jax.ShapeDtypeStruct((Cp, N * P), x.dtype),
        grid_spec=pltpu.PrefetchScalarGridSpec(
            num_scalar_prefetch=0,
            grid=(N // NB,),
            in_specs=[
                pl.BlockSpec((9, L), lambda g: (0, 0)),          # masks
                pl.BlockSpec((Cp, L), lambda g: (0, g)),         # x
                pl.BlockSpec((Cp, 9 * Cp), lambda g: (0, 0)),    # w1
                pl.BlockSpec((Cp, 1), lambda g: (0, 0)),         # s1
                pl.BlockSpec((Cp, 1), lambda g: (0, 0)),         # b1
                pl.BlockSpec((Cp, 9 * Cp), lambda g: (0, 0)),    # w2
                pl.BlockSpec((Cp, 1), lambda g: (0, 0)),         # s2
                pl.BlockSpec((Cp, 1), lambda g: (0, 0)),         # b2
            ],
            out_specs=pl.BlockSpec((Cp, L), lambda g: (0, g)),
        ),
        compiler_params=pltpu.CompilerParams(
            dimension_semantics=("parallel",)),
    )(masks_lane, x_fused, w1_mat, s1c, b1c, w2_mat, s2c, b2c)

    return (out_fused[:C].reshape(C, N, P)
            .transpose(1, 0, 2).reshape(N, C, H, W))


def fold_bn(gamma, beta, mean, var, eps=1e-5):
    scale = gamma / jnp.sqrt(var + eps)
    bias = beta - mean * scale
    return scale, bias


def reference_nchw(x, w1, s1, b1, w2, s2, b2):
    """Pure-JAX f32 reference (dense 3x3 same conv, folded BN, ReLU, residual)."""
    C = x.shape[1]
    w1_hwio = w1.reshape(3, 3, C, C)
    w2_hwio = w2.reshape(3, 3, C, C)
    dn = jax.lax.conv_dimension_numbers(x.shape, w1_hwio.shape,
                                        ("NCHW", "HWIO", "NCHW"))
    y = jax.lax.conv_general_dilated(x, w1_hwio, (1, 1), "SAME",
                                     dimension_numbers=dn)
    y = jnp.maximum(y * s1.reshape(1, C, 1, 1) + b1.reshape(1, C, 1, 1), 0.0)
    z = jax.lax.conv_general_dilated(y, w2_hwio, (1, 1), "SAME",
                                     dimension_numbers=dn)
    z = z * s2.reshape(1, C, 1, 1) + b2.reshape(1, C, 1, 1)
    return jnp.maximum(z + x, 0.0)


if __name__ == "__main__":
    key = jax.random.PRNGKey(0)
    keys = jax.random.split(key, 11)

    N, C, H, W = 2, 4, 16, 16          # inplanes = planes = 4, dimension = 2
    x = jax.random.normal(keys[0], (N, C, H, W), jnp.float32)

    # conv weights: (9, Cin, Cout), tap-major (ky*3 + kx)
    w1 = jax.random.normal(keys[1], (9, C, C), jnp.float32) * 0.2
    w2 = jax.random.normal(keys[2], (9, C, C), jnp.float32) * 0.2

    # BatchNorm params (inference mode: fold running stats + affine)
    g1 = 1.0 + 0.1 * jax.random.normal(keys[3], (C,), jnp.float32)
    be1 = 0.1 * jax.random.normal(keys[4], (C,), jnp.float32)
    m1 = 0.1 * jax.random.normal(keys[5], (C,), jnp.float32)
    v1 = jnp.abs(1.0 + 0.1 * jax.random.normal(keys[6], (C,), jnp.float32))
    g2 = 1.0 + 0.1 * jax.random.normal(keys[7], (C,), jnp.float32)
    be2 = 0.1 * jax.random.normal(keys[8], (C,), jnp.float32)
    m2 = 0.1 * jax.random.normal(keys[9], (C,), jnp.float32)
    v2 = jnp.abs(1.0 + 0.1 * jax.random.normal(keys[10], (C,), jnp.float32))

    s1, b1 = fold_bn(g1, be1, m1, v1)
    s2, b2 = fold_bn(g2, be2, m2, v2)

    ref = reference_nchw(x, w1, s1, b1, w2, s2, b2)

    # f32 MXU operands: tight structural correctness check.
    out_f32 = jax.block_until_ready(
        basic_block_nchw(x, w1, s1, b1, w2, s2, b2, matmul_dtype=jnp.float32))
    assert out_f32.shape == (N, C, H, W)
    assert jnp.allclose(out_f32, ref, rtol=1e-4, atol=1e-4), \
        f"f32 max err {jnp.max(jnp.abs(out_f32 - ref))}"

    # Default perf path: bf16 MXU operands, f32 accumulation/elementwise.
    # Looser tolerance purely from bf16 operand rounding vs the f32 reference.
    out = jax.block_until_ready(basic_block_nchw(x, w1, s1, b1, w2, s2, b2))
    assert out.shape == (N, C, H, W)
    assert jnp.allclose(out, ref, rtol=5e-2, atol=5e-2), \
        f"bf16 max err {jnp.max(jnp.abs(out - ref))}"

    print("KERNEL_OK")
</pallas_src>

<mosaic_0001>
module attributes {stable_mosaic.version = 11 : i64} {
  func.func @basic_block_kernel(%arg0: i32, %arg1: memref<9x512xf32, #tpu.memory_space<vmem>>, %arg2: memref<8x512xf32, #tpu.memory_space<vmem>>, %arg3: memref<8x72xf32, #tpu.memory_space<vmem>>, %arg4: memref<8x1xf32, #tpu.memory_space<vmem>>, %arg5: memref<8x1xf32, #tpu.memory_space<vmem>>, %arg6: memref<8x72xf32, #tpu.memory_space<vmem>>, %arg7: memref<8x1xf32, #tpu.memory_space<vmem>>, %arg8: memref<8x1xf32, #tpu.memory_space<vmem>>, %arg9: memref<8x512xf32, #tpu.memory_space<vmem>>) attributes {dimension_semantics = [#tpu.dimension_semantics<parallel>], iteration_bounds = array<i64: 1>, scalar_prefetch = 0 : i64, scratch_operands = 0 : i64, tpu.core_type = #tpu.core_type<tc>, window_params = [{pipeline_mode = #tpu.pipeline_mode<synchronous>, transform_indices = @transform_0, window_bounds = array<i64: 9, 512>}, {transform_indices = @transform_1, window_bounds = array<i64: 8, 512>}, {pipeline_mode = #tpu.pipeline_mode<synchronous>, transform_indices = @transform_2, window_bounds = array<i64: 8, 72>}, {pipeline_mode = #tpu.pipeline_mode<synchronous>, transform_indices = @transform_3, window_bounds = array<i64: 8, 1>}, {pipeline_mode = #tpu.pipeline_mode<synchronous>, transform_indices = @transform_4, window_bounds = array<i64: 8, 1>}, {pipeline_mode = #tpu.pipeline_mode<synchronous>, transform_indices = @transform_5, window_bounds = array<i64: 8, 72>}, {pipeline_mode = #tpu.pipeline_mode<synchronous>, transform_indices = @transform_6, window_bounds = array<i64: 8, 1>}, {pipeline_mode = #tpu.pipeline_mode<synchronous>, transform_indices = @transform_7, window_bounds = array<i64: 8, 1>}, {transform_indices = @transform_8, window_bounds = array<i64: 8, 512>}]} {
    %c0 = arith.constant 0 : index
    %c0_0 = arith.constant 0 : index
    %0 = vector.load %arg2[%c0, %c0_0] : memref<8x512xf32, #tpu.memory_space<vmem>>, vector<8x512xf32>
    %c0_1 = arith.constant 0 : index
    %c0_2 = arith.constant 0 : index
    %1 = vector.load %arg3[%c0_1, %c0_2] : memref<8x72xf32, #tpu.memory_space<vmem>>, vector<8x72xf32>
    %c17_i32 = arith.constant 17 : i32
    %2 = tpu.dynamic_rotate %0 by %c17_i32 dim 1 : vector<8x512xf32>, i32 -> vector<8x512xf32>
    %c0_3 = arith.constant 0 : index
    %c0_4 = arith.constant 0 : index
    %3 = vector.load %arg1[%c0_3, %c0_4] : memref<9x512xf32, #tpu.memory_space<vmem>>, vector<1x512xf32>
    %4 = vector.shape_cast %3 : vector<1x512xf32> to vector<512xf32>
    %5 = vector.shape_cast %4 : vector<512xf32> to vector<1x512xf32>
    %6 = vector.broadcast %5 : vector<1x512xf32> to vector<8x512xf32>
    %7 = arith.mulf %2, %6 : vector<8x512xf32>
    %c16_i32 = arith.constant 16 : i32
    %8 = tpu.dynamic_rotate %0 by %c16_i32 dim 1 : vector<8x512xf32>, i32 -> vector<8x512xf32>
    %c1 = arith.constant 1 : index
    %c0_5 = arith.constant 0 : index
    %9 = vector.load %arg1[%c1, %c0_5] : memref<9x512xf32, #tpu.memory_space<vmem>>, vector<1x512xf32>
    %10 = vector.shape_cast %9 : vector<1x512xf32> to vector<512xf32>
    %11 = vector.shape_cast %10 : vector<512xf32> to vector<1x512xf32>
    %12 = vector.broadcast %11 : vector<1x512xf32> to vector<8x512xf32>
    %13 = arith.mulf %8, %12 : vector<8x512xf32>
    %c15_i32 = arith.constant 15 : i32
    %14 = tpu.dynamic_rotate %0 by %c15_i32 dim 1 : vector<8x512xf32>, i32 -> vector<8x512xf32>
    %c2 = arith.constant 2 : index
    %c0_6 = arith.constant 0 : index
    %15 = vector.load %arg1[%c2, %c0_6] : memref<9x512xf32, #tpu.memory_space<vmem>>, vector<1x512xf32>
    %16 = vector.shape_cast %15 : vector<1x512xf32> to vector<512xf32>
    %17 = vector.shape_cast %16 : vector<512xf32> to vector<1x512xf32>
    %18 = vector.broadcast %17 : vector<1x512xf32> to vector<8x512xf32>
    %19 = arith.mulf %14, %18 : vector<8x512xf32>
    %c1_i32 = arith.constant 1 : i32
    %20 = tpu.dynamic_rotate %0 by %c1_i32 dim 1 : vector<8x512xf32>, i32 -> vector<8x512xf32>
    %c3 = arith.constant 3 : index
    %c0_7 = arith.constant 0 : index
    %21 = vector.load %arg1[%c3, %c0_7] : memref<9x512xf32, #tpu.memory_space<vmem>>, vector<1x512xf32>
    %22 = vector.shape_cast %21 : vector<1x512xf32> to vector<512xf32>
    %23 = vector.shape_cast %22 : vector<512xf32> to vector<1x512xf32>
    %24 = vector.broadcast %23 : vector<1x512xf32> to vector<8x512xf32>
    %25 = arith.mulf %20, %24 : vector<8x512xf32>
    %c511_i32 = arith.constant 511 : i32
    %26 = tpu.dynamic_rotate %0 by %c511_i32 dim 1 : vector<8x512xf32>, i32 -> vector<8x512xf32>
    %c5 = arith.constant 5 : index
    %c0_8 = arith.constant 0 : index
    %27 = vector.load %arg1[%c5, %c0_8] : memref<9x512xf32, #tpu.memory_space<vmem>>, vector<1x512xf32>
    %28 = vector.shape_cast %27 : vector<1x512xf32> to vector<512xf32>
    %29 = vector.shape_cast %28 : vector<512xf32> to vector<1x512xf32>
    %30 = vector.broadcast %29 : vector<1x512xf32> to vector<8x512xf32>
    %31 = arith.mulf %26, %30 : vector<8x512xf32>
    %c497_i32 = arith.constant 497 : i32
    %32 = tpu.dynamic_rotate %0 by %c497_i32 dim 1 : vector<8x512xf32>, i32 -> vector<8x512xf32>
    %c6 = arith.constant 6 : index
    %c0_9 = arith.constant 0 : index
    %33 = vector.load %arg1[%c6, %c0_9] : memref<9x512xf32, #tpu.memory_space<vmem>>, vector<1x512xf32>
    %34 = vector.shape_cast %33 : vector<1x512xf32> to vector<512xf32>
    %35 = vector.shape_cast %34 : vector<512xf32> to vector<1x512xf32>
    %36 = vector.broadcast %35 : vector<1x512xf32> to vector<8x512xf32>
    %37 = arith.mulf %32, %36 : vector<8x512xf32>
    %c496_i32 = arith.constant 496 : i32
    %38 = tpu.dynamic_rotate %0 by %c496_i32 dim 1 : vector<8x512xf32>, i32 -> vector<8x512xf32>
    %c7 = arith.constant 7 : index
    %c0_10 = arith.constant 0 : index
    %39 = vector.load %arg1[%c7, %c0_10] : memref<9x512xf32, #tpu.memory_space<vmem>>, vector<1x512xf32>
    %40 = vector.shape_cast %39 : vector<1x512xf32> to vector<512xf32>
    %41 = vector.shape_cast %40 : vector<512xf32> to vector<1x512xf32>
    %42 = vector.broadcast %41 : vector<1x512xf32> to vector<8x512xf32>
    %43 = arith.mulf %38, %42 : vector<8x512xf32>
    %c495_i32 = arith.constant 495 : i32
    %44 = tpu.dynamic_rotate %0 by %c495_i32 dim 1 : vector<8x512xf32>, i32 -> vector<8x512xf32>
    %c8 = arith.constant 8 : index
    %c0_11 = arith.constant 0 : index
    %45 = vector.load %arg1[%c8, %c0_11] : memref<9x512xf32, #tpu.memory_space<vmem>>, vector<1x512xf32>
    %46 = vector.shape_cast %45 : vector<1x512xf32> to vector<512xf32>
    %47 = vector.shape_cast %46 : vector<512xf32> to vector<1x512xf32>
    %48 = vector.broadcast %47 : vector<1x512xf32> to vector<8x512xf32>
    %49 = arith.mulf %44, %48 : vector<8x512xf32>
    %50 = tpu.concatenate %7, %13, %19, %25, %0, %31, %37, %43, %49 in 0 : vector<8x512xf32>, vector<8x512xf32>, vector<8x512xf32>, vector<8x512xf32>, vector<8x512xf32>, vector<8x512xf32>, vector<8x512xf32>, vector<8x512xf32>, vector<8x512xf32> -> vector<72x512xf32>
    %cst = arith.constant dense<0.000000e+00> : vector<8x512xf32>
    %51 = tpu.matmul %1, %50, %cst {dimension_numbers = #tpu.dot_dimension_numbers<[1], [0], [0], [1], [0, 0, 1, 1], [], []>} : vector<8x72xf32>, vector<72x512xf32>, vector<8x512xf32> -> vector<8x512xf32>
    %c0_12 = arith.constant 0 : index
    %c0_13 = arith.constant 0 : index
    %52 = vector.load %arg4[%c0_12, %c0_13] : memref<8x1xf32, #tpu.memory_space<vmem>>, vector<8x1xf32>
    %53 = vector.broadcast %52 : vector<8x1xf32> to vector<8x512xf32>
    %54 = arith.mulf %51, %53 : vector<8x512xf32>
    %c0_14 = arith.constant 0 : index
    %c0_15 = arith.constant 0 : index
    %55 = vector.load %arg5[%c0_14, %c0_15] : memref<8x1xf32, #tpu.memory_space<vmem>>, vector<8x1xf32>
    %56 = vector.broadcast %55 : vector<8x1xf32> to vector<8x512xf32>
    %57 = arith.addf %54, %56 : vector<8x512xf32>
    %cst_16 = arith.constant 0.000000e+00 : f32
    %58 = vector.broadcast %cst_16 : f32 to vector<8x512xf32>
    %59 = arith.maximumf %57, %58 : vector<8x512xf32>
    %c0_17 = arith.constant 0 : index
    %c0_18 = arith.constant 0 : index
    %60 = vector.load %arg6[%c0_17, %c0_18] : memref<8x72xf32, #tpu.memory_space<vmem>>, vector<8x72xf32>
    %c17_i32_19 = arith.constant 17 : i32
    %61 = tpu.dynamic_rotate %59 by %c17_i32_19 dim 1 : vector<8x512xf32>, i32 -> vector<8x512xf32>
    %c0_20 = arith.constant 0 : index
    %c0_21 = arith.constant 0 : index
    %62 = vector.load %arg1[%c0_20, %c0_21] : memref<9x512xf32, #tpu.memory_space<vmem>>, vector<1x512xf32>
    %63 = vector.shape_cast %62 : vector<1x512xf32> to vector<512xf32>
    %64 = vector.shape_cast %63 : vector<512xf32> to vector<1x512xf32>
    %65 = vector.broadcast %64 : vector<1x512xf32> to vector<8x512xf32>
    %66 = arith.mulf %61, %65 : vector<8x512xf32>
    %c16_i32_22 = arith.constant 16 : i32
    %67 = tpu.dynamic_rotate %59 by %c16_i32_22 dim 1 : vector<8x512xf32>, i32 -> vector<8x512xf32>
    %c1_23 = arith.constant 1 : index
    %c0_24 = arith.constant 0 : index
    %68 = vector.load %arg1[%c1_23, %c0_24] : memref<9x512xf32, #tpu.memory_space<vmem>>, vector<1x512xf32>
    %69 = vector.shape_cast %68 : vector<1x512xf32> to vector<512xf32>
    %70 = vector.shape_cast %69 : vector<512xf32> to vector<1x512xf32>
    %71 = vector.broadcast %70 : vector<1x512xf32> to vector<8x512xf32>
    %72 = arith.mulf %67, %71 : vector<8x512xf32>
    %c15_i32_25 = arith.constant 15 : i32
    %73 = tpu.dynamic_rotate %59 by %c15_i32_25 dim 1 : vector<8x512xf32>, i32 -> vector<8x512xf32>
    %c2_26 = arith.constant 2 : index
    %c0_27 = arith.constant 0 : index
    %74 = vector.load %arg1[%c2_26, %c0_27] : memref<9x512xf32, #tpu.memory_space<vmem>>, vector<1x512xf32>
    %75 = vector.shape_cast %74 : vector<1x512xf32> to vector<512xf32>
    %76 = vector.shape_cast %75 : vector<512xf32> to vector<1x512xf32>
    %77 = vector.broadcast %76 : vector<1x512xf32> to vector<8x512xf32>
    %78 = arith.mulf %73, %77 : vector<8x512xf32>
    %c1_i32_28 = arith.constant 1 : i32
    %79 = tpu.dynamic_rotate %59 by %c1_i32_28 dim 1 : vector<8x512xf32>, i32 -> vector<8x512xf32>
    %c3_29 = arith.constant 3 : index
    %c0_30 = arith.constant 0 : index
    %80 = vector.load %arg1[%c3_29, %c0_30] : memref<9x512xf32, #tpu.memory_space<vmem>>, vector<1x512xf32>
    %81 = vector.shape_cast %80 : vector<1x512xf32> to vector<512xf32>
    %82 = vector.shape_cast %81 : vector<512xf32> to vector<1x512xf32>
    %83 = vector.broadcast %82 : vector<1x512xf32> to vector<8x512xf32>
    %84 = arith.mulf %79, %83 : vector<8x512xf32>
    %c511_i32_31 = arith.constant 511 : i32
    %85 = tpu.dynamic_rotate %59 by %c511_i32_31 dim 1 : vector<8x512xf32>, i32 -> vector<8x512xf32>
    %c5_32 = arith.constant 5 : index
    %c0_33 = arith.constant 0 : index
    %86 = vector.load %arg1[%c5_32, %c0_33] : memref<9x512xf32, #tpu.memory_space<vmem>>, vector<1x512xf32>
    %87 = vector.shape_cast %86 : vector<1x512xf32> to vector<512xf32>
    %88 = vector.shape_cast %87 : vector<512xf32> to vector<1x512xf32>
    %89 = vector.broadcast %88 : vector<1x512xf32> to vector<8x512xf32>
    %90 = arith.mulf %85, %89 : vector<8x512xf32>
    %c497_i32_34 = arith.constant 497 : i32
    %91 = tpu.dynamic_rotate %59 by %c497_i32_34 dim 1 : vector<8x512xf32>, i32 -> vector<8x512xf32>
    %c6_35 = arith.constant 6 : index
    %c0_36 = arith.constant 0 : index
    %92 = vector.load %arg1[%c6_35, %c0_36] : memref<9x512xf32, #tpu.memory_space<vmem>>, vector<1x512xf32>
    %93 = vector.shape_cast %92 : vector<1x512xf32> to vector<512xf32>
    %94 = vector.shape_cast %93 : vector<512xf32> to vector<1x512xf32>
    %95 = vector.broadcast %94 : vector<1x512xf32> to vector<8x512xf32>
    %96 = arith.mulf %91, %95 : vector<8x512xf32>
    %c496_i32_37 = arith.constant 496 : i32
    %97 = tpu.dynamic_rotate %59 by %c496_i32_37 dim 1 : vector<8x512xf32>, i32 -> vector<8x512xf32>
    %c7_38 = arith.constant 7 : index
    %c0_39 = arith.constant 0 : index
    %98 = vector.load %arg1[%c7_38, %c0_39] : memref<9x512xf32, #tpu.memory_space<vmem>>, vector<1x512xf32>
    %99 = vector.shape_cast %98 : vector<1x512xf32> to vector<512xf32>
    %100 = vector.shape_cast %99 : vector<512xf32> to vector<1x512xf32>
    %101 = vector.broadcast %100 : vector<1x512xf32> to vector<8x512xf32>
    %102 = arith.mulf %97, %101 : vector<8x512xf32>
    %c495_i32_40 = arith.constant 495 : i32
    %103 = tpu.dynamic_rotate %59 by %c495_i32_40 dim 1 : vector<8x512xf32>, i32 -> vector<8x512xf32>
    %c8_41 = arith.constant 8 : index
    %c0_42 = arith.constant 0 : index
    %104 = vector.load %arg1[%c8_41, %c0_42] : memref<9x512xf32, #tpu.memory_space<vmem>>, vector<1x512xf32>
    %105 = vector.shape_cast %104 : vector<1x512xf32> to vector<512xf32>
    %106 = vector.shape_cast %105 : vector<512xf32> to vector<1x512xf32>
    %107 = vector.broadcast %106 : vector<1x512xf32> to vector<8x512xf32>
    %108 = arith.mulf %103, %107 : vector<8x512xf32>
    %109 = tpu.concatenate %66, %72, %78, %84, %59, %90, %96, %102, %108 in 0 : vector<8x512xf32>, vector<8x512xf32>, vector<8x512xf32>, vector<8x512xf32>, vector<8x512xf32>, vector<8x512xf32>, vector<8x512xf32>, vector<8x512xf32>, vector<8x512xf32> -> vector<72x512xf32>
    %cst_43 = arith.constant dense<0.000000e+00> : vector<8x512xf32>
    %110 = tpu.matmul %60, %109, %cst_43 {dimension_numbers = #tpu.dot_dimension_numbers<[1], [0], [0], [1], [0, 0, 1, 1], [], []>} : vector<8x72xf32>, vector<72x512xf32>, vector<8x512xf32> -> vector<8x512xf32>
    %c0_44 = arith.constant 0 : index
    %c0_45 = arith.constant 0 : index
    %111 = vector.load %arg7[%c0_44, %c0_45] : memref<8x1xf32, #tpu.memory_space<vmem>>, vector<8x1xf32>
    %112 = vector.broadcast %111 : vector<8x1xf32> to vector<8x512xf32>
    %113 = arith.mulf %110, %112 : vector<8x512xf32>
    %c0_46 = arith.constant 0 : index
    %c0_47 = arith.constant 0 : index
    %114 = vector.load %arg8[%c0_46, %c0_47] : memref<8x1xf32, #tpu.memory_space<vmem>>, vector<8x1xf32>
    %115 = vector.broadcast %114 : vector<8x1xf32> to vector<8x512xf32>
    %116 = arith.addf %113, %115 : vector<8x512xf32>
    %117 = arith.addf %116, %0 : vector<8x512xf32>
    %cst_48 = arith.constant 0.000000e+00 : f32
    %118 = vector.broadcast %cst_48 : f32 to vector<8x512xf32>
    %119 = arith.maximumf %117, %118 : vector<8x512xf32>
    %c0_49 = arith.constant 0 : index
    %c0_50 = arith.constant 0 : index
    %120 = vector.load %arg9[%c0_49, %c0_50] : memref<8x512xf32, #tpu.memory_space<vmem>>, vector<8x512xf32>
    tpu.vector_store %arg9[%c0_49, %c0_50], %119 {strides = array<i32>} : memref<8x512xf32, #tpu.memory_space<vmem>>, vector<8x512xf32>,
    return
  }
  func.func @transform_0(%arg0: i32) -> (i32, i32) {
    %c0_i32 = arith.constant 0 : i32
    %c0_i32_0 = arith.constant 0 : i32
    %c0_i32_1 = arith.constant 0 : i32
    return %c0_i32, %c0_i32_0 : i32, i32
  }
  func.func @transform_1(%arg0: i32) -> (i32, i32) {
    %c0_i32 = arith.constant 0 : i32
    %c0_i32_0 = arith.constant 0 : i32
    return %c0_i32, %arg0 : i32, i32
  }
  func.func @transform_2(%arg0: i32) -> (i32, i32) {
    %c0_i32 = arith.constant 0 : i32
    %c0_i32_0 = arith.constant 0 : i32
    %c0_i32_1 = arith.constant 0 : i32
    return %c0_i32, %c0_i32_0 : i32, i32
  }
  func.func @transform_3(%arg0: i32) -> (i32, i32) {
    %c0_i32 = arith.constant 0 : i32
    %c0_i32_0 = arith.constant 0 : i32
    %c0_i32_1 = arith.constant 0 : i32
    return %c0_i32, %c0_i32_0 : i32, i32
  }
  func.func @transform_4(%arg0: i32) -> (i32, i32) {
    %c0_i32 = arith.constant 0 : i32
    %c0_i32_0 = arith.constant 0 : i32
    %c0_i32_1 = arith.constant 0 : i32
    return %c0_i32, %c0_i32_0 : i32, i32
  }
  func.func @transform_5(%arg0: i32) -> (i32, i32) {
    %c0_i32 = arith.constant 0 : i32
    %c0_i32_0 = arith.constant 0 : i32
    %c0_i32_1 = arith.constant 0 : i32
    return %c0_i32, %c0_i32_0 : i32, i32
  }
  func.func @transform_6(%arg0: i32) -> (i32, i32) {
    %c0_i32 = arith.constant 0 : i32
    %c0_i32_0 = arith.constant 0 : i32
    %c0_i32_1 = arith.constant 0 : i32
    return %c0_i32, %c0_i32_0 : i32, i32
  }
  func.func @transform_7(%arg0: i32) -> (i32, i32) {
    %c0_i32 = arith.constant 0 : i32
    %c0_i32_0 = arith.constant 0 : i32
    %c0_i32_1 = arith.constant 0 : i32
    return %c0_i32, %c0_i32_0 : i32, i32
  }
  func.func @transform_8(%arg0: i32) -> (i32, i32) {
    %c0_i32 = arith.constant 0 : i32
    %c0_i32_0 = arith.constant 0 : i32
    return %c0_i32, %arg0 : i32, i32
  }
}

</mosaic_0001>

<llo_original>
// kernel: tpu_custom_call.1
$region0: #{tpu_custom_call.1}
  #allocation0 [shape = 'u32[]', space=smem, size = 0x4, offset = 0x4, fixed_abs, tag = 'smem constant byte address 0x4 - core index']
  #allocation1 [shape = 'u32[144,128]{1,0:T(1,128)}', space=vmem, size = 0x12000, scoped, tag = 'internal scratch']
  %s0 = inlined_call_operand.hbm [shape: f32[9,512], index: 0, kind: input, shape index: {}]
  %s1 = inlined_call_operand.vmem [shape: f32[8,512], index: 1, kind: input, shape index: {}]
  %s2 = inlined_call_operand.vmem [shape: f32[8,72], index: 2, kind: input, shape index: {}]
  %s3 = inlined_call_operand.vmem [shape: f32[8,1], index: 3, kind: input, shape index: {}]
  %s4 = inlined_call_operand.vmem [shape: f32[8,1], index: 4, kind: input, shape index: {}]
  %s5 = inlined_call_operand.vmem [shape: f32[8,72], index: 5, kind: input, shape index: {}]
  %s6 = inlined_call_operand.vmem [shape: f32[8,1], index: 6, kind: input, shape index: {}]
  %s7 = inlined_call_operand.vmem [shape: f32[8,1], index: 7, kind: input, shape index: {}]
  %s8 = inlined_call_operand.hbm [shape: f32[8,512], index: 8, kind: output, shape index: {}]
  %s9 = sld [smem:[#allocation0]]
  $region46: #{tpu_custom_call.1} parent=0
    _
  %s11 = ssub.s32 1, %s9
  %s12 = scalar_select 0, %s11, %s9
  $region1: #{tpu_custom_call.1} parent=0
    #allocation2 [shape = 'u8[32768]{0}', space=vmem, size = 0x8000, scoped, tag = 'input window, operand 0, single buffered']
    #allocation3 [shape = 's32[1]{0}', space=sflag, size = 0x4, scoped, tag = 'scoped memory for tpu_custom_call.1']
    #allocation4 [shape = 's32[1]{0}', space=sflag, size = 0x4, scoped, tag = 'scoped memory for tpu_custom_call.1']
    #allocation5 [shape = 'u8[16384]{0}', space=vmem, size = 0x4000, scoped, tag = 'output window, operand 0, single buffered']
    %13 = vsyncpa [#allocation3], 0
    %14 = vsyncpa [#allocation4], 0
    // Predicated region
    $region2: #{tpu_custom_call.1} parent=1 // pred_check
      _
    $region3: #{tpu_custom_call.1} parent=1 // pred_check_branch
      %16 = sbr.rel (0) target = $region5
    $region4: #{tpu_custom_call.1} parent=1 // pred_region
      %s18 = ssub.s32 1024, 1024
      %19 = vsyncadd [#allocation3], %s18
      %s20 = sshll.u32 [#allocation2], 4
      %s21 = int_to_ptr.vmem [resolvable:$true] %s20
      %26 = dma.hbm_to_vmem [thread:$0]  %s0, 1024, %s21, [#allocation3], 512, 512, 32
    $region5: #{tpu_custom_call.1} parent=1 // pred_fallthru
      _
    // Predicated region
    $region6: #{tpu_custom_call.1} parent=1 // pred_check
      _
    $region7: #{tpu_custom_call.1} parent=1 // pred_check_branch
      %28 = sbr.rel (0) target = $region9
    $region8: #{tpu_custom_call.1} parent=1 // pred_region
      _
    $region9: #{tpu_custom_call.1} parent=1 // pred_fallthru
      _
    // Predicated region
    $region10: #{tpu_custom_call.1} parent=1 // pred_check
      _
    $region11: #{tpu_custom_call.1} parent=1 // pred_check_branch
      %30 = sbr.rel (0) target = $region13
    $region12: #{tpu_custom_call.1} parent=1 // pred_region
      _
    $region13: #{tpu_custom_call.1} parent=1 // pred_fallthru
      _
    // Predicated region
    $region14: #{tpu_custom_call.1} parent=1 // pred_check
      _
    $region15: #{tpu_custom_call.1} parent=1 // pred_check_branch
      %32 = sbr.rel (0) target = $region17
    $region16: #{tpu_custom_call.1} parent=1 // pred_region
      _
    $region17: #{tpu_custom_call.1} parent=1 // pred_fallthru
      _
    // Predicated region
    $region18: #{tpu_custom_call.1} parent=1 // pred_check
      _
    $region19: #{tpu_custom_call.1} parent=1 // pred_check_branch
      %34 = sbr.rel (0) target = $region21
    $region20: #{tpu_custom_call.1} parent=1 // pred_region
      _
    $region21: #{tpu_custom_call.1} parent=1 // pred_fallthru
      _
    // Predicated region
    $region22: #{tpu_custom_call.1} parent=1 // pred_check
      _
    $region23: #{tpu_custom_call.1} parent=1 // pred_check_branch
      %36 = sbr.rel (0) target = $region25
    $region24: #{tpu_custom_call.1} parent=1 // pred_region
      _
    $region25: #{tpu_custom_call.1} parent=1 // pred_fallthru
      _
    // Predicated region
    $region26: #{tpu_custom_call.1} parent=1 // pred_check
      _
    $region27: #{tpu_custom_call.1} parent=1 // pred_check_branch
      %38 = sbr.rel (0) target = $region29
    $region28: #{tpu_custom_call.1} parent=1 // pred_region
      _
    $region29: #{tpu_custom_call.1} parent=1 // pred_fallthru
      _
    // Predicated region
    $region30: #{tpu_custom_call.1} parent=1 // pred_check
      _
    $region31: #{tpu_custom_call.1} parent=1 // pred_check_branch
      %40 = sbr.rel (0) target = $region33
    $region32: #{tpu_custom_call.1} parent=1 // pred_region
      _
    $region33: #{tpu_custom_call.1} parent=1 // pred_fallthru
      _
    // Predicated region
    $region34: #{tpu_custom_call.1} parent=1 // pred_check
      _
    $region35: #{tpu_custom_call.1} parent=1 // pred_check_branch
      %42 = sbr.rel (0) target = $region37
    $region36: #{tpu_custom_call.1} parent=1 // pred_region
      %43 = dma.done [#allocation3], 1024
    $region37: #{tpu_custom_call.1} parent=1 // pred_fallthru
      _
    %v44 = vld [vmem:[%s1] sm:$0xff]
    %v45 = vld [vmem:[%s1 + $0x8] sm:$0xff]
    %v46 = vld [vmem:[%s1 + $0x10] sm:$0xff]
    %v47 = vld [vmem:[%s1 + $0x18] sm:$0xff]
    %v48 = vld [vmem:[%s2] sm:$0xff]
    %49 = vrot.lane.b32.xlu0 %v44, 17
    %v50 = vpop.permute.xlu0 %49
    %51 = vrot.lane.b32.xlu0 %v45, 17
    %v52 = vpop.permute.xlu0 %51
    %53 = vrot.lane.b32.xlu0 %v46, 17
    %v54 = vpop.permute.xlu0 %53
    %55 = vrot.lane.b32.xlu0 %v47, 17
    %v56 = vpop.permute.xlu0 %55
    %v57 = vlaneseq
    %v58 = vand.u32 %v57, 127
    %vm59 = vcmp.lt.s32.totalorder %v58, 17
    %v60 = vsel %vm59, %v54, %v56
    %v61 = vsel %vm59, %v52, %v54
    %v62 = vsel %vm59, %v50, %v52
    %v63 = vsel %vm59, %v56, %v50
    %v64 = vld [vmem:[#allocation2] ss:$8 sm:$0xf]
    %v66 = vlaneseq
    %v67 = vshrl.u32 %v66, 7
    %v68 = vsub.s32 0, %v67
    %v69 = vrot.slane %v64, %v68
    %v70 = vlaneseq
    %v71 = vshrl.u32 %v70, 7
    %v72 = vsub.s32 1, %v71
    %v73 = vrot.slane %v64, %v72
    %v74 = vlaneseq
    %v75 = vshrl.u32 %v74, 7
    %v76 = vsub.s32 2, %v75
    %v77 = vrot.slane %v64, %v76
    %v78 = vlaneseq
    %v79 = vshrl.u32 %v78, 7
    %v80 = vsub.s32 3, %v79
    %v81 = vrot.slane %v64, %v80
    %v86 = vmul.f32 %v63, %v69
    %v87 = vmul.f32 %v62, %v73
    %v88 = vmul.f32 %v61, %v77
    %v89 = vmul.f32 %v60, %v81
    %90 = vrot.lane.b32.xlu0 %v44, 16
    %v91 = vpop.permute.xlu0 %90
    %92 = vrot.lane.b32.xlu0 %v45, 16
    %v93 = vpop.permute.xlu0 %92
    %94 = vrot.lane.b32.xlu0 %v46, 16
    %v95 = vpop.permute.xlu0 %94
    %96 = vrot.lane.b32.xlu0 %v47, 16
    %v97 = vpop.permute.xlu0 %96
    %vm98 = vcmp.lt.s32.totalorder %v58, 16
    %v99 = vsel %vm98, %v95, %v97
    %v100 = vsel %vm98, %v93, %v95
    %v101 = vsel %vm98, %v91, %v93
    %v102 = vsel %vm98, %v97, %v91
    %s103 = scalar_lea.vmem [#allocation2], 1
    %v104 = vld [vmem:[%s103] ss:$8 sm:$0xf]
    %v106 = vlaneseq
    %v107 = vshrl.u32 %v106, 7
    %v108 = vsub.s32 0, %v107
    %v109 = vrot.slane %v104, %v108
    %v110 = vlaneseq
    %v111 = vshrl.u32 %v110, 7
    %v112 = vsub.s32 1, %v111
    %v113 = vrot.slane %v104, %v112
    %v114 = vlaneseq
    %v115 = vshrl.u32 %v114, 7
    %v116 = vsub.s32 2, %v115
    %v117 = vrot.slane %v104, %v116
    %v118 = vlaneseq
    %v119 = vshrl.u32 %v118, 7
    %v120 = vsub.s32 3, %v119
    %v121 = vrot.slane %v104, %v120
    %v126 = vmul.f32 %v102, %v109
    %v127 = vmul.f32 %v101, %v113
    %v128 = vmul.f32 %v100, %v117
    %v129 = vmul.f32 %v99, %v121
    %130 = vrot.lane.b32.xlu0 %v44, 15
    %v131 = vpop.permute.xlu0 %130
    %132 = vrot.lane.b32.xlu0 %v45, 15
    %v133 = vpop.permute.xlu0 %132
    %134 = vrot.lane.b32.xlu0 %v46, 15
    %v135 = vpop.permute.xlu0 %134
    %136 = vrot.lane.b32.xlu0 %v47, 15
    %v137 = vpop.permute.xlu0 %136
    %vm138 = vcmp.lt.s32.totalorder %v58, 15
    %v139 = vsel %vm138, %v135, %v137
    %v140 = vsel %vm138, %v133, %v135
    %v141 = vsel %vm138, %v131, %v133
    %v142 = vsel %vm138, %v137, %v131
    %s143 = scalar_lea.vmem [#allocation2], 2
    %v144 = vld [vmem:[%s143] ss:$8 sm:$0xf]
    %v146 = vlaneseq
    %v147 = vshrl.u32 %v146, 7
    %v148 = vsub.s32 0, %v147
    %v149 = vrot.slane %v144, %v148
    %v150 = vlaneseq
    %v151 = vshrl.u32 %v150, 7
    %v152 = vsub.s32 1, %v151
    %v153 = vrot.slane %v144, %v152
    %v154 = vlaneseq
    %v155 = vshrl.u32 %v154, 7
    %v156 = vsub.s32 2, %v155
    %v157 = vrot.slane %v144, %v156
    %v158 = vlaneseq
    %v159 = vshrl.u32 %v158, 7
    %v160 = vsub.s32 3, %v159
    %v161 = vrot.slane %v144, %v160
    %v166 = vmul.f32 %v142, %v149
    %v167 = vmul.f32 %v141, %v153
    %v168 = vmul.f32 %v140, %v157
    %v169 = vmul.f32 %v139, %v161
    %170 = vrot.lane.b32.xlu0 %v44, 1
    %v171 = vpop.permute.xlu0 %170
    %172 = vrot.lane.b32.xlu0 %v45, 1
    %v173 = vpop.permute.xlu0 %172
    %174 = vrot.lane.b32.xlu0 %v46, 1
    %v175 = vpop.permute.xlu0 %174
    %176 = vrot.lane.b32.xlu0 %v47, 1
    %v177 = vpop.permute.xlu0 %176
    %vm178 = vcmp.lt.s32.totalorder %v58, 1
    %v179 = vsel %vm178, %v175, %v177
    %v180 = vsel %vm178, %v173, %v175
    %v181 = vsel %vm178, %v171, %v173
    %v182 = vsel %vm178, %v177, %v171
    %s183 = scalar_lea.vmem [#allocation2], 3
    %v184 = vld [vmem:[%s183] ss:$8 sm:$0xf]
    %v186 = vlaneseq
    %v187 = vshrl.u32 %v186, 7
    %v188 = vsub.s32 0, %v187
    %v189 = vrot.slane %v184, %v188
    %v190 = vlaneseq
    %v191 = vshrl.u32 %v190, 7
    %v192 = vsub.s32 1, %v191
    %v193 = vrot.slane %v184, %v192
    %v194 = vlaneseq
    %v195 = vshrl.u32 %v194, 7
    %v196 = vsub.s32 2, %v195
    %v197 = vrot.slane %v184, %v196
    %v198 = vlaneseq
    %v199 = vshrl.u32 %v198, 7
    %v200 = vsub.s32 3, %v199
    %v201 = vrot.slane %v184, %v200
    %v206 = vmul.f32 %v182, %v189
    %v207 = vmul.f32 %v181, %v193
    %v208 = vmul.f32 %v180, %v197
    %v209 = vmul.f32 %v179, %v201
    %210 = vrot.lane.b32.xlu0 %v44, 127
    %v211 = vpop.permute.xlu0 %210
    %212 = vrot.lane.b32.xlu0 %v45, 127
    %v213 = vpop.permute.xlu0 %212
    %214 = vrot.lane.b32.xlu0 %v46, 127
    %v215 = vpop.permute.xlu0 %214
    %216 = vrot.lane.b32.xlu0 %v47, 127
    %v217 = vpop.permute.xlu0 %216
    %vm218 = vcmp.lt.s32.totalorder %v58, 127
    %v219 = vsel %vm218, %v215, %v217
    %v220 = vsel %vm218, %v213, %v215
    %v221 = vsel %vm218, %v211, %v213
    %v222 = vsel %vm218, %v217, %v211
    %s223 = scalar_lea.vmem [#allocation2], 5
    %v224 = vld [vmem:[%s223] ss:$8 sm:$0xf]
    %v226 = vlaneseq
    %v227 = vshrl.u32 %v226, 7
    %v228 = vsub.s32 0, %v227
    %v229 = vrot.slane %v224, %v228
    %v230 = vlaneseq
    %v231 = vshrl.u32 %v230, 7
    %v232 = vsub.s32 1, %v231
    %v233 = vrot.slane %v224, %v232
    %v234 = vlaneseq
    %v235 = vshrl.u32 %v234, 7
    %v236 = vsub.s32 2, %v235
    %v237 = vrot.slane %v224, %v236
    %v238 = vlaneseq
    %v239 = vshrl.u32 %v238, 7
    %v240 = vsub.s32 3, %v239
    %v241 = vrot.slane %v224, %v240
    %v246 = vmul.f32 %v221, %v229
    %v247 = vmul.f32 %v220, %v233
    %v248 = vmul.f32 %v219, %v237
    %v249 = vmul.f32 %v222, %v241
    %250 = vrot.lane.b32.xlu0 %v44, 113
    %v251 = vpop.permute.xlu0 %250
    %252 = vrot.lane.b32.xlu0 %v45, 113
    %v253 = vpop.permute.xlu0 %252
    %254 = vrot.lane.b32.xlu0 %v46, 113
    %v255 = vpop.permute.xlu0 %254
    %256 = vrot.lane.b32.xlu0 %v47, 113
    %v257 = vpop.permute.xlu0 %256
    %vm258 = vcmp.lt.s32.totalorder %v58, 113
    %v259 = vsel %vm258, %v255, %v257
    %v260 = vsel %vm258, %v253, %v255
    %v261 = vsel %vm258, %v251, %v253
    %v262 = vsel %vm258, %v257, %v251
    %s263 = scalar_lea.vmem [#allocation2], 6
    %v264 = vld [vmem:[%s263] ss:$8 sm:$0xf]
    %v266 = vlaneseq
    %v267 = vshrl.u32 %v266, 7
    %v268 = vsub.s32 0, %v267
    %v269 = vrot.slane %v264, %v268
    %v270 = vlaneseq
    %v271 = vshrl.u32 %v270, 7
    %v272 = vsub.s32 1, %v271
    %v273 = vrot.slane %v264, %v272
    %v274 = vlaneseq
    %v275 = vshrl.u32 %v274, 7
    %v276 = vsub.s32 2, %v275
    %v277 = vrot.slane %v264, %v276
    %v278 = vlaneseq
    %v279 = vshrl.u32 %v278, 7
    %v280 = vsub.s32 3, %v279
    %v281 = vrot.slane %v264, %v280
    %v286 = vmul.f32 %v261, %v269
    %v287 = vmul.f32 %v260, %v273
    %v288 = vmul.f32 %v259, %v277
    %v289 = vmul.f32 %v262, %v281
    %290 = vrot.lane.b32.xlu0 %v44, 112
    %v291 = vpop.permute.xlu0 %290
    %292 = vrot.lane.b32.xlu0 %v45, 112
    %v293 = vpop.permute.xlu0 %292
    %294 = vrot.lane.b32.xlu0 %v46, 112
    %v295 = vpop.permute.xlu0 %294
    %296 = vrot.lane.b32.xlu0 %v47, 112
    %v297 = vpop.permute.xlu0 %296
    %vm298 = vcmp.lt.s32.totalorder %v58, 112
    %v299 = vsel %vm298, %v295, %v297
    %v300 = vsel %vm298, %v293, %v295
    %v301 = vsel %vm298, %v291, %v293
    %v302 = vsel %vm298, %v297, %v291
    %s303 = scalar_lea.vmem [#allocation2], 7
    %v304 = vld [vmem:[%s303] ss:$8 sm:$0xf]
    %v306 = vlaneseq
    %v307 = vshrl.u32 %v306, 7
    %v308 = vsub.s32 0, %v307
    %v309 = vrot.slane %v304, %v308
    %v310 = vlaneseq
    %v311 = vshrl.u32 %v310, 7
    %v312 = vsub.s32 1, %v311
    %v313 = vrot.slane %v304, %v312
    %v314 = vlaneseq
    %v315 = vshrl.u32 %v314, 7
    %v316 = vsub.s32 2, %v315
    %v317 = vrot.slane %v304, %v316
    %v318 = vlaneseq
    %v319 = vshrl.u32 %v318, 7
    %v320 = vsub.s32 3, %v319
    %v321 = vrot.slane %v304, %v320
    %v326 = vmul.f32 %v301, %v309
    %v327 = vmul.f32 %v300, %v313
    %v328 = vmul.f32 %v299, %v317
    %v329 = vmul.f32 %v302, %v321
    %330 = vrot.lane.b32.xlu0 %v44, 111
    %v331 = vpop.permute.xlu0 %330
    %332 = vrot.lane.b32.xlu0 %v45, 111
    %v333 = vpop.permute.xlu0 %332
    %334 = vrot.lane.b32.xlu0 %v46, 111
    %v335 = vpop.permute.xlu0 %334
    %336 = vrot.lane.b32.xlu0 %v47, 111
    %v337 = vpop.permute.xlu0 %336
    %vm338 = vcmp.lt.s32.totalorder %v58, 111
    %v339 = vsel %vm338, %v335, %v337
    %v340 = vsel %vm338, %v333, %v335
    %v341 = vsel %vm338, %v331, %v333
    %v342 = vsel %vm338, %v337, %v331
    %s343 = scalar_lea.vmem [#allocation2], 32
    %v344 = vld [vmem:[%s343] ss:$8 sm:$0xf]
    %v346 = vlaneseq
    %v347 = vshrl.u32 %v346, 7
    %v348 = vsub.s32 0, %v347
    %v349 = vrot.slane %v344, %v348
    %v350 = vlaneseq
    %v351 = vshrl.u32 %v350, 7
    %v352 = vsub.s32 1, %v351
    %v353 = vrot.slane %v344, %v352
    %v354 = vlaneseq
    %v355 = vshrl.u32 %v354, 7
    %v356 = vsub.s32 2, %v355
    %v357 = vrot.slane %v344, %v356
    %v358 = vlaneseq
    %v359 = vshrl.u32 %v358, 7
    %v360 = vsub.s32 3, %v359
    %v361 = vrot.slane %v344, %v360
    %v366 = vmul.f32 %v341, %v349
    %v367 = vmul.f32 %v340, %v353
    %v368 = vmul.f32 %v339, %v357
    %v369 = vmul.f32 %v342, %v361
    %vm370 = vcmask 588800
    %v372 = vsel %vm370, %v48, 0
    %374 = vmatprep.subr.mxu0 %v87
    %375 = vmatpush1.msra.mxu0 %v86
    %376 = vmatprep.subr.mxu0 %v127
    %377 = vmatpush1.msra.mxu0 %v126
    %378 = vmatprep.subr.mxu0 %v167
    %379 = vmatpush1.msra.mxu0 %v166
    %380 = vmatprep.subr.mxu0 %v207
    %381 = vmatpush1.msra.mxu0 %v206
    %382 = vmatprep.subr.mxu0 %v45
    %383 = vmatpush1.msra.mxu0 %v44
    %384 = vmatprep.subr.mxu0 %v247
    %385 = vmatpush1.msra.mxu0 %v246
    %386 = vmatprep.subr.mxu0 %v287
    %387 = vmatpush1.msra.mxu0 %v286
    %388 = vmatprep.subr.mxu0 %v327
    %389 = vmatpush1.msra.mxu0 %v326
    %390 = vmatprep.subr.mxu0 %v367
    %391 = vmatpush1.msra.mxu0 %v366
    %392 = vmatprep.subr.mxu0 0.0
    %393 = vmatpush1.msra.mxu0 0.0
    %394 = vmatprep.subr.mxu0 0.0
    %395 = vmatpush1.msra.mxu0 0.0
    %396 = vmatprep.subr.mxu0 0.0
    %397 = vmatpush1.msra.mxu0 0.0
    %398 = vmatprep.subr.mxu0 0.0
    %399 = vmatpush1.msra.mxu0 0.0
    %400 = vmatprep.subr.mxu0 0.0
    %401 = vmatpush1.msra.mxu0 0.0
    %402 = vmatprep.subr.mxu0 0.0
    %403 = vmatpush1.msra.mxu0 0.0
    %404 = vmatprep.subr.mxu0 0.0
    %405 = vmatpush1.msra.mxu0 0.0
    %406 = vmatprep.subr.mxu0 0.0
    %407 = vmatpush1.msra.mxu0 0.0
    %408 = vmatprep.subr.mxu0 0.0
    %409 = vmatpush1.msra.mxu0 0.0
    %410 = vmatprep.subr.mxu0 0.0
    %411 = vmatpush1.msra.mxu0 0.0
    %412 = vmatprep.subr.mxu0 0.0
    %413 = vmatpush1.msra.mxu0 0.0
    %414 = vmatprep.subr.mxu0 0.0
    %415 = vmatpush1.msra.mxu0 0.0
    %416 = vmatprep.subr.mxu0 0.0
    %417 = vmatpush1.msra.mxu0 0.0
    %418 = vmatprep.subr.mxu0 0.0
    %419 = vmatpush1.msra.mxu0 0.0
    %420 = vmatprep.subr.mxu0 0.0
    %421 = vmatpush1.msra.mxu0 0.0
    %422 = vmatprep.subr.mxu0 0.0
    %423 = vmatpush1.msra.mxu0 0.0
    %424 = vmatprep.subr.mxu0 0.0
    %425 = vmatpush1.msra.mxu0 0.0
    %426 = vmatprep.subr.mxu0 0.0
    %427 = vmatpush1.msra.mxu0 0.0
    %428 = vmatprep.subr.mxu0 0.0
    %429 = vmatpush1.msra.mxu0 0.0
    %430 = vmatprep.subr.mxu0 0.0
    %431 = vmatpush1.msra.mxu0 0.0
    %432 = vmatprep.subr.mxu0 0.0
    %433 = vmatpush1.msra.mxu0 0.0
    %434 = vmatprep.subr.mxu0 0.0
    %435 = vmatpush1.msra.mxu0 0.0
    %436 = vmatprep.subr.mxu0 0.0
    %437 = vmatpush1.msra.mxu0 0.0
    %438 = vmatprep.mubr.f32.mxu0 0.0
    %439 = vmatmul.mubr.f32.gmra.mrb[0].mxu0 %v372
    %v440 = vpop.f32.mrb[0].mxu0
    %v441 = vadd.f32 0.0, %v440
    %v442 = vpop.f32.mrb[0].mxu0
    %v443 = vadd.f32 0.0, %v442
    %444 = vdwg.mxu0
    %445 = vmatprep.subr.mxu0 %v89
    %446 = vmatpush1.msra.mxu0 %v88
    %447 = vmatprep.subr.mxu0 %v129
    %448 = vmatpush1.msra.mxu0 %v128
    %449 = vmatprep.subr.mxu0 %v169
    %450 = vmatpush1.msra.mxu0 %v168
    %451 = vmatprep.subr.mxu0 %v209
    %452 = vmatpush1.msra.mxu0 %v208
    %453 = vmatprep.subr.mxu0 %v47
    %454 = vmatpush1.msra.mxu0 %v46
    %455 = vmatprep.subr.mxu0 %v249
    %456 = vmatpush1.msra.mxu0 %v248
    %457 = vmatprep.subr.mxu0 %v289
    %458 = vmatpush1.msra.mxu0 %v288
    %459 = vmatprep.subr.mxu0 %v329
    %460 = vmatpush1.msra.mxu0 %v328
    %461 = vmatprep.subr.mxu0 %v369
    %462 = vmatpush1.msra.mxu0 %v368
    %463 = vmatprep.subr.mxu0 0.0
    %464 = vmatpush1.msra.mxu0 0.0
    %465 = vmatprep.subr.mxu0 0.0
    %466 = vmatpush1.msra.mxu0 0.0
    %467 = vmatprep.subr.mxu0 0.0
    %468 = vmatpush1.msra.mxu0 0.0
    %469 = vmatprep.subr.mxu0 0.0
    %470 = vmatpush1.msra.mxu0 0.0
    %471 = vmatprep.subr.mxu0 0.0
    %472 = vmatpush1.msra.mxu0 0.0
    %473 = vmatprep.subr.mxu0 0.0
    %474 = vmatpush1.msra.mxu0 0.0
    %475 = vmatprep.subr.mxu0 0.0
    %476 = vmatpush1.msra.mxu0 0.0
    %477 = vmatprep.subr.mxu0 0.0
    %478 = vmatpush1.msra.mxu0 0.0
    %479 = vmatprep.subr.mxu0 0.0
    %480 = vmatpush1.msra.mxu0 0.0
    %481 = vmatprep.subr.mxu0 0.0
    %482 = vmatpush1.msra.mxu0 0.0
    %483 = vmatprep.subr.mxu0 0.0
    %484 = vmatpush1.msra.mxu0 0.0
    %485 = vmatprep.subr.mxu0 0.0
    %486 = vmatpush1.msra.mxu0 0.0
    %487 = vmatprep.subr.mxu0 0.0
    %488 = vmatpush1.msra.mxu0 0.0
    %489 = vmatprep.subr.mxu0 0.0
    %490 = vmatpush1.msra.mxu0 0.0
    %491 = vmatprep.subr.mxu0 0.0
    %492 = vmatpush1.msra.mxu0 0.0
    %493 = vmatprep.subr.mxu0 0.0
    %494 = vmatpush1.msra.mxu0 0.0
    %495 = vmatprep.subr.mxu0 0.0
    %496 = vmatpush1.msra.mxu0 0.0
    %497 = vmatprep.subr.mxu0 0.0
    %498 = vmatpush1.msra.mxu0 0.0
    %499 = vmatprep.subr.mxu0 0.0
    %500 = vmatpush1.msra.mxu0 0.0
    %501 = vmatprep.subr.mxu0 0.0
    %502 = vmatpush1.msra.mxu0 0.0
    %503 = vmatprep.subr.mxu0 0.0
    %504 = vmatpush1.msra.mxu0 0.0
    %505 = vmatprep.subr.mxu0 0.0
    %506 = vmatpush1.msra.mxu0 0.0
    %507 = vmatprep.subr.mxu0 0.0
    %508 = vmatpush1.msra.mxu0 0.0
    %509 = vmatprep.mubr.f32.mxu0 0.0
    %510 = vmatmul.mubr.f32.gmra.mrb[0].mxu0 %v372
    %v511 = vpop.f32.mrb[0].mxu0
    %v512 = vadd.f32 0.0, %v511
    %v513 = vpop.f32.mrb[0].mxu0
    %v514 = vadd.f32 0.0, %v513
    %515 = vdwg.mxu0
    %v516 = vld [vmem:[%s3] sm:$0xff]
    %518 = vset.pattern.permute.xlu0 0
    %519 = vperm.xlu0 %518, %v516
    %v520 = vpop.permute.xlu0 %519
    %v522 = vmul.f32 %v441, %v520
    %v523 = vmul.f32 %v443, %v520
    %v524 = vmul.f32 %v512, %v520
    %v525 = vmul.f32 %v514, %v520
    %v526 = vld [vmem:[%s4] sm:$0xff]
    %528 = vset.pattern.permute.xlu0 0
    %529 = vperm.xlu0 %528, %v526
    %v530 = vpop.permute.xlu0 %529
    %v532 = vadd.f32 %v522, %v530
    %v533 = vadd.f32 %v523, %v530
    %v534 = vadd.f32 %v524, %v530
    %v535 = vadd.f32 %v525, %v530
    %v536 = vmax.f32 %v532, 0.0
    %v537 = vmax.f32 %v533, 0.0
    %v538 = vmax.f32 %v534, 0.0
    %v539 = vmax.f32 %v535, 0.0
    %v540 = vld [vmem:[%s5] sm:$0xff]
    %541 = vrot.lane.b32.xlu0 %v536, 17
    %v542 = vpop.permute.xlu0 %541
    %543 = vrot.lane.b32.xlu0 %v537, 17
    %v544 = vpop.permute.xlu0 %543
    %545 = vrot.lane.b32.xlu0 %v538, 17
    %v546 = vpop.permute.xlu0 %545
    %547 = vrot.lane.b32.xlu0 %v539, 17
    %v548 = vpop.permute.xlu0 %547
    %v549 = vsel %vm59, %v546, %v548
    %v550 = vsel %vm59, %v544, %v546
    %v551 = vsel %vm59, %v542, %v544
    %v552 = vsel %vm59, %v548, %v542
    %v553 = vmul.f32 %v552, %v69
    %v554 = vmul.f32 %v551, %v73
    %v555 = vmul.f32 %v550, %v77
    %v556 = vmul.f32 %v549, %v81
    %557 = vrot.lane.b32.xlu0 %v536, 16
    %v558 = vpop.permute.xlu0 %557
    %559 = vrot.lane.b32.xlu0 %v537, 16
    %v560 = vpop.permute.xlu0 %559
    %561 = vrot.lane.b32.xlu0 %v538, 16
    %v562 = vpop.permute.xlu0 %561
    %563 = vrot.lane.b32.xlu0 %v539, 16
    %v564 = vpop.permute.xlu0 %563
    %v565 = vsel %vm98, %v562, %v564
    %v566 = vsel %vm98, %v560, %v562
    %v567 = vsel %vm98, %v558, %v560
    %v568 = vsel %vm98, %v564, %v558
    %v569 = vmul.f32 %v568, %v109
    %v570 = vmul.f32 %v567, %v113
    %v571 = vmul.f32 %v566, %v117
    %v572 = vmul.f32 %v565, %v121
    %573 = vrot.lane.b32.xlu0 %v536, 15
    %v574 = vpop.permute.xlu0 %573
    %575 = vrot.lane.b32.xlu0 %v537, 15
    %v576 = vpop.permute.xlu0 %575
    %577 = vrot.lane.b32.xlu0 %v538, 15
    %v578 = vpop.permute.xlu0 %577
    %579 = vrot.lane.b32.xlu0 %v539, 15
    %v580 = vpop.permute.xlu0 %579
    %v581 = vsel %vm138, %v578, %v580
    %v582 = vsel %vm138, %v576, %v578
    %v583 = vsel %vm138, %v574, %v576
    %v584 = vsel %vm138, %v580, %v574
    %v585 = vmul.f32 %v584, %v149
    %v586 = vmul.f32 %v583, %v153
    %v587 = vmul.f32 %v582, %v157
    %v588 = vmul.f32 %v581, %v161
    %589 = vrot.lane.b32.xlu0 %v536, 1
    %v590 = vpop.permute.xlu0 %589
    %591 = vrot.lane.b32.xlu0 %v537, 1
    %v592 = vpop.permute.xlu0 %591
    %593 = vrot.lane.b32.xlu0 %v538, 1
    %v594 = vpop.permute.xlu0 %593
    %595 = vrot.lane.b32.xlu0 %v539, 1
    %v596 = vpop.permute.xlu0 %595
    %v597 = vsel %vm178, %v594, %v596
    %v598 = vsel %vm178, %v592, %v594
    %v599 = vsel %vm178, %v590, %v592
    %v600 = vsel %vm178, %v596, %v590
    %v601 = vmul.f32 %v600, %v189
    %v602 = vmul.f32 %v599, %v193
    %v603 = vmul.f32 %v598, %v197
    %v604 = vmul.f32 %v597, %v201
    %605 = vrot.lane.b32.xlu0 %v536, 127
    %v606 = vpop.permute.xlu0 %605
    %607 = vrot.lane.b32.xlu0 %v537, 127
    %v608 = vpop.permute.xlu0 %607
    %609 = vrot.lane.b32.xlu0 %v538, 127
    %v610 = vpop.permute.xlu0 %609
    %611 = vrot.lane.b32.xlu0 %v539, 127
    %v612 = vpop.permute.xlu0 %611
    %v613 = vsel %vm218, %v610, %v612
    %v614 = vsel %vm218, %v608, %v610
    %v615 = vsel %vm218, %v606, %v608
    %v616 = vsel %vm218, %v612, %v606
    %v617 = vmul.f32 %v615, %v229
    %v618 = vmul.f32 %v614, %v233
    %v619 = vmul.f32 %v613, %v237
    %v620 = vmul.f32 %v616, %v241
    %621 = vrot.lane.b32.xlu0 %v536, 113
    %v622 = vpop.permute.xlu0 %621
    %623 = vrot.lane.b32.xlu0 %v537, 113
    %v624 = vpop.permute.xlu0 %623
    %625 = vrot.lane.b32.xlu0 %v538, 113
    %v626 = vpop.permute.xlu0 %625
    %627 = vrot.lane.b32.xlu0 %v539, 113
    %v628 = vpop.permute.xlu0 %627
    %v629 = vsel %vm258, %v626, %v628
    %v630 = vsel %vm258, %v624, %v626
    %v631 = vsel %vm258, %v622, %v624
    %v632 = vsel %vm258, %v628, %v622
    %v633 = vmul.f32 %v631, %v269
    %v634 = vmul.f32 %v630, %v273
    %v635 = vmul.f32 %v629, %v277
    %v636 = vmul.f32 %v632, %v281
    %637 = vrot.lane.b32.xlu0 %v536, 112
    %v638 = vpop.permute.xlu0 %637
    %639 = vrot.lane.b32.xlu0 %v537, 112
    %v640 = vpop.permute.xlu0 %639
    %641 = vrot.lane.b32.xlu0 %v538, 112
    %v642 = vpop.permute.xlu0 %641
    %643 = vrot.lane.b32.xlu0 %v539, 112
    %v644 = vpop.permute.xlu0 %643
    %v645 = vsel %vm298, %v642, %v644
    %v646 = vsel %vm298, %v640, %v642
    %v647 = vsel %vm298, %v638, %v640
    %v648 = vsel %vm298, %v644, %v638
    %v649 = vmul.f32 %v647, %v309
    %v650 = vmul.f32 %v646, %v313
    %v651 = vmul.f32 %v645, %v317
    %v652 = vmul.f32 %v648, %v321
    %653 = vrot.lane.b32.xlu0 %v536, 111
    %v654 = vpop.permute.xlu0 %653
    %655 = vrot.lane.b32.xlu0 %v537, 111
    %v656 = vpop.permute.xlu0 %655
    %657 = vrot.lane.b32.xlu0 %v538, 111
    %v658 = vpop.permute.xlu0 %657
    %659 = vrot.lane.b32.xlu0 %v539, 111
    %v660 = vpop.permute.xlu0 %659
    %v661 = vsel %vm338, %v658, %v660
    %v662 = vsel %vm338, %v656, %v658
    %v663 = vsel %vm338, %v654, %v656
    %v664 = vsel %vm338, %v660, %v654
    %v665 = vmul.f32 %v663, %v349
    %v666 = vmul.f32 %v662, %v353
    %v667 = vmul.f32 %v661, %v357
    %v668 = vmul.f32 %v664, %v361
    %v670 = vsel %vm370, %v540, 0
    %672 = vmatprep.subr.mxu0 %v554
    %673 = vmatpush1.msra.mxu0 %v553
    %674 = vmatprep.subr.mxu0 %v570
    %675 = vmatpush1.msra.mxu0 %v569
    %676 = vmatprep.subr.mxu0 %v586
    %677 = vmatpush1.msra.mxu0 %v585
    %678 = vmatprep.subr.mxu0 %v602
    %679 = vmatpush1.msra.mxu0 %v601
    %680 = vmatprep.subr.mxu0 %v537
    %681 = vmatpush1.msra.mxu0 %v536
    %682 = vmatprep.subr.mxu0 %v618
    %683 = vmatpush1.msra.mxu0 %v617
    %684 = vmatprep.subr.mxu0 %v634
    %685 = vmatpush1.msra.mxu0 %v633
    %686 = vmatprep.subr.mxu0 %v650
    %687 = vmatpush1.msra.mxu0 %v649
    %688 = vmatprep.subr.mxu0 %v666
    %689 = vmatpush1.msra.mxu0 %v665
    %690 = vmatprep.subr.mxu0 0.0
    %691 = vmatpush1.msra.mxu0 0.0
    %692 = vmatprep.subr.mxu0 0.0
    %693 = vmatpush1.msra.mxu0 0.0
    %694 = vmatprep.subr.mxu0 0.0
    %695 = vmatpush1.msra.mxu0 0.0
    %696 = vmatprep.subr.mxu0 0.0
    %697 = vmatpush1.msra.mxu0 0.0
    %698 = vmatprep.subr.mxu0 0.0
    %699 = vmatpush1.msra.mxu0 0.0
    %700 = vmatprep.subr.mxu0 0.0
    %701 = vmatpush1.msra.mxu0 0.0
    %702 = vmatprep.subr.mxu0 0.0
    %703 = vmatpush1.msra.mxu0 0.0
    %704 = vmatprep.subr.mxu0 0.0
    %705 = vmatpush1.msra.mxu0 0.0
    %706 = vmatprep.subr.mxu0 0.0
    %707 = vmatpush1.msra.mxu0 0.0
    %708 = vmatprep.subr.mxu0 0.0
    %709 = vmatpush1.msra.mxu0 0.0
    %710 = vmatprep.subr.mxu0 0.0
    %711 = vmatpush1.msra.mxu0 0.0
    %712 = vmatprep.subr.mxu0 0.0
    %713 = vmatpush1.msra.mxu0 0.0
    %714 = vmatprep.subr.mxu0 0.0
    %715 = vmatpush1.msra.mxu0 0.0
    %716 = vmatprep.subr.mxu0 0.0
    %717 = vmatpush1.msra.mxu0 0.0
    %718 = vmatprep.subr.mxu0 0.0
    %719 = vmatpush1.msra.mxu0 0.0
    %720 = vmatprep.subr.mxu0 0.0
    %721 = vmatpush1.msra.mxu0 0.0
    %722 = vmatprep.subr.mxu0 0.0
    %723 = vmatpush1.msra.mxu0 0.0
    %724 = vmatprep.subr.mxu0 0.0
    %725 = vmatpush1.msra.mxu0 0.0
    %726 = vmatprep.subr.mxu0 0.0
    %727 = vmatpush1.msra.mxu0 0.0
    %728 = vmatprep.subr.mxu0 0.0
    %729 = vmatpush1.msra.mxu0 0.0
    %730 = vmatprep.subr.mxu0 0.0
    %731 = vmatpush1.msra.mxu0 0.0
    %732 = vmatprep.subr.mxu0 0.0
    %733 = vmatpush1.msra.mxu0 0.0
    %734 = vmatprep.subr.mxu0 0.0
    %735 = vmatpush1.msra.mxu0 0.0
    %736 = vmatprep.mubr.f32.mxu0 0.0
    %737 = vmatmul.mubr.f32.gmra.mrb[0].mxu0 %v670
    %v738 = vpop.f32.mrb[0].mxu0
    %v739 = vadd.f32 0.0, %v738
    %v740 = vpop.f32.mrb[0].mxu0
    %v741 = vadd.f32 0.0, %v740
    %742 = vdwg.mxu0
    %743 = vmatprep.subr.mxu0 %v556
    %744 = vmatpush1.msra.mxu0 %v555
    %745 = vmatprep.subr.mxu0 %v572
    %746 = vmatpush1.msra.mxu0 %v571
    %747 = vmatprep.subr.mxu0 %v588
    %748 = vmatpush1.msra.mxu0 %v587
    %749 = vmatprep.subr.mxu0 %v604
    %750 = vmatpush1.msra.mxu0 %v603
    %751 = vmatprep.subr.mxu0 %v539
    %752 = vmatpush1.msra.mxu0 %v538
    %753 = vmatprep.subr.mxu0 %v620
    %754 = vmatpush1.msra.mxu0 %v619
    %755 = vmatprep.subr.mxu0 %v636
    %756 = vmatpush1.msra.mxu0 %v635
    %757 = vmatprep.subr.mxu0 %v652
    %758 = vmatpush1.msra.mxu0 %v651
    %759 = vmatprep.subr.mxu0 %v668
    %760 = vmatpush1.msra.mxu0 %v667
    %761 = vmatprep.subr.mxu0 0.0
    %762 = vmatpush1.msra.mxu0 0.0
    %763 = vmatprep.subr.mxu0 0.0
    %764 = vmatpush1.msra.mxu0 0.0
    %765 = vmatprep.subr.mxu0 0.0
    %766 = vmatpush1.msra.mxu0 0.0
    %767 = vmatprep.subr.mxu0 0.0
    %768 = vmatpush1.msra.mxu0 0.0
    %769 = vmatprep.subr.mxu0 0.0
    %770 = vmatpush1.msra.mxu0 0.0
    %771 = vmatprep.subr.mxu0 0.0
    %772 = vmatpush1.msra.mxu0 0.0
    %773 = vmatprep.subr.mxu0 0.0
    %774 = vmatpush1.msra.mxu0 0.0
    %775 = vmatprep.subr.mxu0 0.0
    %776 = vmatpush1.msra.mxu0 0.0
    %777 = vmatprep.subr.mxu0 0.0
    %778 = vmatpush1.msra.mxu0 0.0
    %779 = vmatprep.subr.mxu0 0.0
    %780 = vmatpush1.msra.mxu0 0.0
    %781 = vmatprep.subr.mxu0 0.0
    %782 = vmatpush1.msra.mxu0 0.0
    %783 = vmatprep.subr.mxu0 0.0
    %784 = vmatpush1.msra.mxu0 0.0
    %785 = vmatprep.subr.mxu0 0.0
    %786 = vmatpush1.msra.mxu0 0.0
    %787 = vmatprep.subr.mxu0 0.0
    %788 = vmatpush1.msra.mxu0 0.0
    %789 = vmatprep.subr.mxu0 0.0
    %790 = vmatpush1.msra.mxu0 0.0
    %791 = vmatprep.subr.mxu0 0.0
    %792 = vmatpush1.msra.mxu0 0.0
    %793 = vmatprep.subr.mxu0 0.0
    %794 = vmatpush1.msra.mxu0 0.0
    %795 = vmatprep.subr.mxu0 0.0
    %796 = vmatpush1.msra.mxu0 0.0
    %797 = vmatprep.subr.mxu0 0.0
    %798 = vmatpush1.msra.mxu0 0.0
    %799 = vmatprep.subr.mxu0 0.0
    %800 = vmatpush1.msra.mxu0 0.0
    %801 = vmatprep.subr.mxu0 0.0
    %802 = vmatpush1.msra.mxu0 0.0
    %803 = vmatprep.subr.mxu0 0.0
    %804 = vmatpush1.msra.mxu0 0.0
    %805 = vmatprep.subr.mxu0 0.0
    %806 = vmatpush1.msra.mxu0 0.0
    %807 = vmatprep.mubr.f32.mxu0 0.0
    %808 = vmatmul.mubr.f32.gmra.mrb[0].mxu0 %v670
    %v809 = vpop.f32.mrb[0].mxu0
    %v810 = vadd.f32 0.0, %v809
    %v811 = vpop.f32.mrb[0].mxu0
    %v812 = vadd.f32 0.0, %v811
    %813 = vdwg.mxu0
    %v814 = vld [vmem:[%s6] sm:$0xff]
    %816 = vset.pattern.permute.xlu0 0
    %817 = vperm.xlu0 %816, %v814
    %v818 = vpop.permute.xlu0 %817
    %v820 = vmul.f32 %v739, %v818
    %v821 = vmul.f32 %v741, %v818
    %v822 = vmul.f32 %v810, %v818
    %v823 = vmul.f32 %v812, %v818
    %v824 = vld [vmem:[%s7] sm:$0xff]
    %826 = vset.pattern.permute.xlu0 0
    %827 = vperm.xlu0 %826, %v824
    %v828 = vpop.permute.xlu0 %827
    %v830 = vadd.f32 %v820, %v828
    %v831 = vadd.f32 %v821, %v828
    %v832 = vadd.f32 %v822, %v828
    %v833 = vadd.f32 %v823, %v828
    %v834 = vadd.f32 %v830, %v44
    %v835 = vadd.f32 %v831, %v45
    %v836 = vadd.f32 %v832, %v46
    %v837 = vadd.f32 %v833, %v47
    %v838 = vmax.f32 %v834, 0.0
    %v839 = vmax.f32 %v835, 0.0
    %v840 = vmax.f32 %v836, 0.0
    %v841 = vmax.f32 %v837, 0.0
    %842 = vst [vmem:[#allocation5] sm:$0xff] %v838
    %843 = vst [vmem:[#allocation5 + $0x8] sm:$0xff] %v839
    %844 = vst [vmem:[#allocation5 + $0x10] sm:$0xff] %v840
    %845 = vst [vmem:[#allocation5 + $0x18] sm:$0xff] %v841
    // Predicated region
    $region38: #{tpu_custom_call.1} parent=1 // pred_check
      _
    $region39: #{tpu_custom_call.1} parent=1 // pred_check_branch
      %847 = sbr.rel (0) target = $region41
    $region40: #{tpu_custom_call.1} parent=1 // pred_region
      %s849 = ssub.s32 512, 512
      %850 = vsyncadd [#allocation4], %s849
      %s852 = sshll.u32 [#allocation5], 4
      %s853 = int_to_ptr.vmem [resolvable:$true] %s852
      %855 = dma.vmem_to_hbm [thread:$0]  %s853, 512, %s8, [#allocation4]
    $region41: #{tpu_custom_call.1} parent=1 // pred_fallthru
      _
    // Predicated region
    $region42: #{tpu_custom_call.1} parent=1 // pred_check
      _
    $region43: #{tpu_custom_call.1} parent=1 // pred_check_branch
      %857 = sbr.rel (0) target = $region45
    $region44: #{tpu_custom_call.1} parent=1 // pred_region
      %858 = dma.done [#allocation4], 512
    $region45: #{tpu_custom_call.1} parent=1 // pred_fallthru
      _
    %859 = vsyncpa [#allocation3], 1
    %860 = vsyncpa [#allocation4], 1

</llo_original>
